<compile_context>
chip_gen: v7x
topology: tpu7x:2x2x1
jax: 0.10.0
libtpu: 0.0.40
codegen_flags: <defaults>
</compile_context>

<pallas_src>
import functools

import jax
import jax.numpy as jnp
from jax.experimental import pallas as pl
from jax.experimental.pallas import tpu as pltpu

LANES = 128      # lane width (last dim of every block)
SUBLANES = 8     # accumulator block rows (one f32 vreg tile)
TM_MAX = 2048    # max rows per input block (~1 MiB f32 / 0.5 MiB bf16 per buffer)
ROW_ALIGN = 16   # row alignment (covers f32 (8,128) and bf16 (16,128) tiling)
NUM_SPLITS = 2   # leading 'parallel' axis -> one half per TensorCore on v7x


def _cdiv(a: int, b: int) -> int:
    return -(-a // b)


def _round_up(a: int, b: int) -> int:
    return _cdiv(a, b) * b


def _bce_gan_kernel(x_ref, o_ref, *, real: bool):
    """One (TM, 128) block: fused sigmoid+BCE -> (8, 128) running partial sums."""
    i = pl.program_id(1)  # reduction step within this split

    @pl.when(i == 0)
    def _():
        o_ref[...] = jnp.zeros_like(o_ref)

    x = x_ref[...].astype(jnp.float32)
    # BCE with ones/zeros target, fused into one stable softplus:
    #   real=True :  -log(sigmoid(x))     = softplus(-x)
    #   real=False:  -log(1 - sigmoid(x)) = softplus( x)
    z = -x if real else x
    # stable softplus: max(z, 0) + log(1 + exp(-|z|))  (exp + log only)
    sp = jnp.maximum(z, 0.0) + jnp.log(1.0 + jnp.exp(-jnp.abs(z)))
    # nn.BCELoss clamps log terms at -100 -> per-element loss capped at 100.
    loss = jnp.minimum(sp, 100.0)

    # Sublane-aligned partial sums: (TM,128) -> (TM/8, 8, 128) -> sum over axis 0.
    # Pure vreg-wise VPU adds, no cross-lane traffic in the hot loop.
    o_ref[...] += loss.reshape(-1, SUBLANES, LANES).sum(axis=0)


def bce_gan_loss(pred_logits: jax.Array, real: bool = True) -> jax.Array:
    """Pallas equivalent of BCEGANLoss.forward(pred_logits, real)."""
    real = bool(real)
    n_valid = int(pred_logits.size)
    dtype = pred_logits.dtype

    # ---- layout glue (no compute): flatten to a lane-dense (rows, 128) slab ----
    rows = _cdiv(n_valid, LANES)
    # Rows per block: as big as possible (amortize ~0.35 us per-grid-step cost)
    # but no more than one split's worth of aligned rows. Capped at TM_MAX so the
    # double-buffered input stays well inside VMEM on all of v5e/v6e/v7x.
    tm = min(TM_MAX, _round_up(_cdiv(rows, NUM_SPLITS), ROW_ALIGN))
    rows_padded = _round_up(rows, tm * NUM_SPLITS)
    blocks_per_split = rows_padded // (tm * NUM_SPLITS)
    n_padded = rows_padded * LANES

    flat = jnp.ravel(pred_logits)
    if n_padded != n_valid:
        # Pad with a logit whose per-element loss is exactly 0 for this target,
        # so the kernel needs no masking and dividing by n_valid stays unbiased.
        pad_val = 1e9 if real else -1e9
        flat = jnp.pad(flat, (0, n_padded - n_valid), constant_values=pad_val)
    x2d = flat.reshape(rows_padded, LANES)

    kernel = functools.partial(_bce_gan_kernel, real=real)
    partials = pl.pallas_call(
        kernel,
        out_shape=jax.ShapeDtypeStruct((NUM_SPLITS * SUBLANES, LANES), jnp.float32),
        grid_spec=pltpu.PrefetchScalarGridSpec(
            num_scalar_prefetch=0,
            grid=(NUM_SPLITS, blocks_per_split),
            in_specs=[
                pl.BlockSpec(
                    (tm, LANES),
                    lambda c, i, _bps=blocks_per_split: (c * _bps + i, 0),
                )
            ],
            # Each split owns one (8, 128) partial-sum block, resident across the
            # reduction ('arbitrary') axis -> accumulator-in-output pattern.
            out_specs=pl.BlockSpec((SUBLANES, LANES), lambda c, i: (c, 0)),
        ),
        compiler_params=pltpu.CompilerParams(
            dimension_semantics=("parallel", "arbitrary"),
        ),
    )(x2d)

    # Tiny final reduction + mean (NUM_SPLITS * 8 * 128 floats) in plain JAX.
    return jnp.sum(partials) / jnp.float32(n_valid)


def _reference(pred_logits: jax.Array, real: bool = True) -> jax.Array:
    p = jax.nn.sigmoid(pred_logits.astype(jnp.float32))
    t = jnp.float32(1.0) if real else jnp.float32(0.0)
    log_p = jnp.maximum(jnp.log(p), -100.0)
    log_1mp = jnp.maximum(jnp.log(1.0 - p), -100.0)
    return jnp.mean(-(t * log_p + (1.0 - t) * log_1mp))


if __name__ == "__main__":
    key = jax.random.PRNGKey(0)
    # Typical discriminator patch-logits: NCHW = (2, 4, 16, 16)
    x = jax.random.normal(key, (2, 4, 16, 16), dtype=jnp.float32) * 2.0

    loss_real = jax.block_until_ready(bce_gan_loss(x, real=True))
    loss_fake = jax.block_until_ready(bce_gan_loss(x, real=False))

    ref_real = _reference(x, real=True)
    ref_fake = _reference(x, real=False)

    assert jnp.allclose(loss_real, ref_real, rtol=1e-5, atol=1e-5), (loss_real, ref_real)
    assert jnp.allclose(loss_fake, ref_fake, rtol=1e-5, atol=1e-5), (loss_fake, ref_fake)

    print("KERNEL_OK")
</pallas_src>

<mosaic_0001>
module attributes {stable_mosaic.version = 11 : i64} {
  func.func @_bce_gan_kernel(%arg0: i32, %arg1: i32, %arg2: memref<16x128xf32, #tpu.memory_space<vmem>>, %arg3: memref<8x128xf32, #tpu.memory_space<vmem>>) attributes {dimension_semantics = [#tpu.dimension_semantics<parallel>, #tpu.dimension_semantics<arbitrary>], iteration_bounds = array<i64: 2, 1>, scalar_prefetch = 0 : i64, scratch_operands = 0 : i64, tpu.core_type = #tpu.core_type<tc>, window_params = [{transform_indices = @transform_0, window_bounds = array<i64: 16, 128>}, {transform_indices = @transform_1, window_bounds = array<i64: 8, 128>}]} {
    %c0_i32 = arith.constant 0 : i32
    %0 = arith.cmpi eq, %arg1, %c0_i32 : i32
    %1 = arith.extui %0 : i1 to i32
    %c0_i32_0 = arith.constant 0 : i32
    %2 = arith.cmpi ne, %1, %c0_i32_0 : i32
    scf.if %2 {
      %cst_11 = arith.constant 0.000000e+00 : f32
      %23 = vector.broadcast %cst_11 : f32 to vector<8x128xf32>
      %c0_12 = arith.constant 0 : index
      %c0_13 = arith.constant 0 : index
      %24 = vector.load %arg3[%c0_12, %c0_13] : memref<8x128xf32, #tpu.memory_space<vmem>>, vector<8x128xf32>
      tpu.vector_store %arg3[%c0_12, %c0_13], %23 {strides = array<i32>} : memref<8x128xf32, #tpu.memory_space<vmem>>, vector<8x128xf32>,
    } else {
    }
    %c0 = arith.constant 0 : index
    %c0_1 = arith.constant 0 : index
    %3 = vector.load %arg2[%c0, %c0_1] : memref<16x128xf32, #tpu.memory_space<vmem>>, vector<16x128xf32>
    %cst = arith.constant 0.000000e+00 : f32
    %4 = vector.broadcast %cst : f32 to vector<16x128xf32>
    %5 = arith.subf %4, %3 : vector<16x128xf32>
    %cst_2 = arith.constant 0.000000e+00 : f32
    %6 = vector.broadcast %cst_2 : f32 to vector<16x128xf32>
    %7 = arith.maximumf %5, %6 : vector<16x128xf32>
    %8 = math.absf %5 : vector<16x128xf32>
    %cst_3 = arith.constant 0.000000e+00 : f32
    %9 = vector.broadcast %cst_3 : f32 to vector<16x128xf32>
    %10 = arith.subf %9, %8 : vector<16x128xf32>
    %11 = math.exp %10 : vector<16x128xf32>
    %cst_4 = arith.constant 1.000000e+00 : f32
    %12 = vector.broadcast %cst_4 : f32 to vector<16x128xf32>
    %13 = arith.addf %12, %11 : vector<16x128xf32>
    %14 = math.log %13 : vector<16x128xf32>
    %15 = arith.addf %7, %14 : vector<16x128xf32>
    %cst_5 = arith.constant 1.000000e+02 : f32
    %16 = vector.broadcast %cst_5 : f32 to vector<16x128xf32>
    %17 = arith.minimumf %15, %16 : vector<16x128xf32>
    %c0_6 = arith.constant 0 : index
    %c0_7 = arith.constant 0 : index
    %18 = vector.load %arg3[%c0_6, %c0_7] : memref<8x128xf32, #tpu.memory_space<vmem>>, vector<8x128xf32>
    %19 = vector.shape_cast %17 : vector<16x128xf32> to vector<2x8x128xf32>
    %cst_8 = arith.constant dense<0.000000e+00> : vector<8x128xf32>
    %20 = vector.multi_reduction <add>, %19, %cst_8 [0] : vector<2x8x128xf32> to vector<8x128xf32>
    %21 = arith.addf %18, %20 : vector<8x128xf32>
    %c0_9 = arith.constant 0 : index
    %c0_10 = arith.constant 0 : index
    %22 = vector.load %arg3[%c0_9, %c0_10] : memref<8x128xf32, #tpu.memory_space<vmem>>, vector<8x128xf32>
    tpu.vector_store %arg3[%c0_9, %c0_10], %21 {strides = array<i32>} : memref<8x128xf32, #tpu.memory_space<vmem>>, vector<8x128xf32>,
    return
  }
  func.func @transform_0(%arg0: i32, %arg1: i32) -> (i32, i32) {
    %c1_i32 = arith.constant 1 : i32
    %0 = arith.muli %arg0, %c1_i32 : i32
    %1 = arith.addi %0, %arg1 : i32
    %c0_i32 = arith.constant 0 : i32
    %c0_i32_0 = arith.constant 0 : i32
    return %1, %c0_i32 : i32, i32
  }
  func.func @transform_1(%arg0: i32, %arg1: i32) -> (i32, i32) {
    %c0_i32 = arith.constant 0 : i32
    %c0_i32_0 = arith.constant 0 : i32
    return %arg0, %c0_i32 : i32, i32
  }
}

</mosaic_0001>

<llo_original>
// kernel: tpu_custom_call.1
$region0: #{tpu_custom_call.1}
  #allocation0 [shape = 'u32[]', space=smem, size = 0x4, offset = 0x4, fixed_abs, tag = 'smem constant byte address 0x4 - core index']
  #allocation1 [shape = 'u32[144,128]{1,0:T(1,128)}', space=vmem, size = 0x12000, scoped, tag = 'internal scratch']
  %s0 = inlined_call_operand.hbm [shape: f32[32,128], index: 0, kind: input, shape index: {}]
  %s1 = inlined_call_operand.hbm [shape: f32[16,128], index: 1, kind: output, shape index: {}]
  %s2 = sld [smem:[#allocation0]]
  $region45: #{tpu_custom_call.1} parent=0
    _
  %s4 = ssub.s32 1, %s2
  %s5 = scalar_select 0, %s4, %s2
  $region1: #{tpu_custom_call.1} parent=0
    #allocation2 [shape = 'u8[16384]{0}', space=vmem, size = 0x4000, scoped, tag = 'input window, operand 0']
    #allocation3 [shape = 's32[2]{0}', space=sflag, size = 0x8, scoped, tag = 'scoped memory for tpu_custom_call.1']
    #allocation4 [shape = 's32[2]{0}', space=sflag, size = 0x8, scoped, tag = 'scoped memory for tpu_custom_call.1']
    #allocation5 [shape = 'u8[8192]{0}', space=vmem, size = 0x2000, scoped, tag = 'output window, operand 0']
    %6 = vsyncpa [#allocation3], 0
    %s7 = scalar_lea.sflag [#allocation3], 1
    %8 = vsyncpa %s7, 0
    %9 = vsyncpa [#allocation4], 0
    %s10 = scalar_lea.sflag [#allocation4], 1
    %11 = vsyncpa %s10, 0
    loop: start=0, step=1, limit=4
    $region2: #{tpu_custom_call.1} parent=1 // loop_pre_header
      _
    $region3: #{tpu_custom_call.1} parent=1 // loop_header
      %s13 = sphi 0, %s17
      %p14 = scmp.ge.s32.totalorder %s13, 4
      %s20 = sphi 0, %s32
      %s21 = sphi 0, %s28
      %s22 = sphi 0, %s20
      %s23 = sphi 0, %s21
      %s24 = sphi 0, %s22
      %s25 = sphi 0, %s23
      %s37 = sphi 0, %s39
      %s40 = sphi 0, %s37
      %s41 = sphi 0, %s40
      %s57 = sphi 0, %s41
      %s63 = sphi 0, %s65
      %s66 = sphi 0, %s63
      %s67 = sphi 0, %s66
      %s83 = sphi 0, %s67
    $region4: #{tpu_custom_call.1} parent=1 // loop_header_branch
      %16 = sbr.rel (%p14) target = $region8
    $region5: #{tpu_custom_call.1} parent=1 // loop_body
      %s18 = ssub.s32 %s13, 1
      %s19 = ssub.s32 %s13, 2
      %s26 = sadd.s32 1, %s21
      %p27 = scmp.ge.s32.totalorder %s26, 1
      %s28 = scalar_select %p27, 0, %s26
      %s29 = sadd.s32 1, %s20
      %s30 = scalar_select %p27, %s29, %s20
      %p31 = scmp.ge.s32.totalorder %s30, 2
      %s32 = scalar_select %p31, 0, %s30
      %s33 = sadd.s32 %s20, %s21
      %s34 = sadd.s32 %s32, %s28
      %s35 = ssub.s32 %s33, %s34
      %p36 = scmp.eq.s32.totalorder %s35, 0
      %s38 = sadd.s32 %s37, 1
      %s39 = scalar_select %p36, %s37, %s38
      %p42 = pneg %p36
      %p43 = scmp.eq.s32.totalorder %s13, 1
      %p44 = por %p42, %p43
      %p45 = scmp.ne.s32.totalorder %s37, %s40
      %p46 = scmp.eq.s32.totalorder %s13, 0
      %p47 = por %p45, %p46
      %p48 = scmp.ne.s32.totalorder %s37, %s40
      %p49 = scmp.eq.s32.totalorder %s18, 1
      %p50 = por %p48, %p49
      %p51 = scmp.ne.s32.totalorder %s40, %s41
      %p52 = scmp.eq.s32.totalorder %s18, 0
      %p53 = por %p51, %p52
      %p54 = scmp.ne.s32.totalorder %s40, %s41
      %p55 = scmp.eq.s32.totalorder %s19, 1
      %p56 = por %p54, %p55
      %p58 = scmp.ne.s32.totalorder %s41, %s57
      %p59 = scmp.eq.s32.totalorder %s19, 0
      %p60 = por %p58, %p59
      %s61 = ssub.s32 %s20, %s32
      %p62 = scmp.eq.s32.totalorder %s61, 0
      %s64 = sadd.s32 %s63, 1
      %s65 = scalar_select %p62, %s63, %s64
      %p68 = pneg %p62
      %p69 = scmp.eq.s32.totalorder %s13, 1
      %p70 = por %p68, %p69
      %p71 = scmp.ne.s32.totalorder %s63, %s66
      %p72 = scmp.eq.s32.totalorder %s13, 0
      %p73 = por %p71, %p72
      %p74 = scmp.ne.s32.totalorder %s63, %s66
      %p75 = scmp.eq.s32.totalorder %s18, 1
      %p76 = por %p74, %p75
      %p77 = scmp.ne.s32.totalorder %s66, %s67
      %p78 = scmp.eq.s32.totalorder %s18, 0
      %p79 = por %p77, %p78
      %p80 = scmp.ne.s32.totalorder %s66, %s67
      %p81 = scmp.eq.s32.totalorder %s19, 1
      %p82 = por %p80, %p81
      %p84 = scmp.ne.s32.totalorder %s67, %s83
      %p85 = scmp.eq.s32.totalorder %s19, 0
      %p86 = por %p84, %p85
      %p87 = scmp.le.s32.totalorder 1, %s13
      %p88 = scmp.lt.s32.totalorder %s13, 3
      %p89 = pnand %p87, %p88
      %p90 = pneg %p89
      // Predicated region
      $region9: #{tpu_custom_call.1} parent=5 // pred_check
        _
      $region10: #{tpu_custom_call.1} parent=5 // pred_check_branch
        %92 = sbr.rel (%p89) target = $region12
      $region11: #{tpu_custom_call.1} parent=5 // pred_region
        %s93 = ssub.s32 %s13, 1
      $region12: #{tpu_custom_call.1} parent=5 // pred_fallthru
        _
      %p94 = scmp.lt.s32.totalorder %s13, 2
      // Predicated region
      $region13: #{tpu_custom_call.1} parent=5 // pred_check
        %p95 = pneg %p94
      $region14: #{tpu_custom_call.1} parent=5 // pred_check_branch
        %97 = sbr.rel (%p95) target = $region16
      $region15: #{tpu_custom_call.1} parent=5 // pred_region
        // Predicated region
        $region17: #{tpu_custom_call.1} parent=15 // pred_check
          %p98 = pneg %p47
        $region18: #{tpu_custom_call.1} parent=15 // pred_check_branch
          %100 = sbr.rel (%p98) target = $region20
        $region19: #{tpu_custom_call.1} parent=15 // pred_region
          %s101 = sand.u32 %s37, 1
          %s102 = scalar_lea.sflag [#allocation3], %s101
          %s103 = sand.u32 %s37, 1
          %s104 = smul.addr %s103, 16
          %s105 = scalar_lea.vmem [#allocation2], %s104
          %s106 = sadd.s32 %s20, %s21
          %s107 = smul.u32 2, %s106
          %s109 = ssub.s32 256, 256
          %110 = vsyncadd %s102, %s109
          %s111 = smul.addr %s107, 128
          %s112 = scalar_lea.hbm %s0, %s111
          %s113 = sshll.u32 %s105, 4
          %s114 = int_to_ptr.vmem [resolvable:$true] %s113
          %119 = dma.hbm_to_vmem [thread:$0]  %s112, 256, %s114, %s102, 128, 128, 8
        $region20: #{tpu_custom_call.1} parent=15 // pred_fallthru
          _
      $region16: #{tpu_custom_call.1} parent=5 // pred_fallthru
        _
      %p120 = scmp.le.s32.totalorder 1, %s13
      %p121 = scmp.lt.s32.totalorder %s13, 3
      %p122 = pnand %p120, %p121
      %p123 = pneg %p122
      // Predicated region
      $region21: #{tpu_custom_call.1} parent=5 // pred_check
        _
      $region22: #{tpu_custom_call.1} parent=5 // pred_check_branch
        %125 = sbr.rel (%p122) target = $region24
      $region23: #{tpu_custom_call.1} parent=5 // pred_region
        %s126 = ssub.s32 %s13, 1
        %s127 = sand.u32 %s40, 1
        %s128 = scalar_lea.sflag [#allocation3], %s127
        %s129 = sand.u32 %s40, 1
        %s130 = smul.addr %s129, 16
        %s131 = scalar_lea.vmem [#allocation2], %s130
        // Predicated region
        $region25: #{tpu_custom_call.1} parent=23 // pred_check
          %p132 = pneg %p53
        $region26: #{tpu_custom_call.1} parent=23 // pred_check_branch
          %134 = sbr.rel (%p132) target = $region28
        $region27: #{tpu_custom_call.1} parent=23 // pred_region
          %135 = dma.done %s128, 256
        $region28: #{tpu_custom_call.1} parent=23 // pred_fallthru
          _
        %s136 = sand.u32 %s40, 1
        %s137 = scalar_lea.sflag [#allocation3], %s136
        %s138 = sand.u32 %s40, 1
        %s139 = smul.addr %s138, 16
        %s140 = scalar_lea.vmem [#allocation2], %s139
        %p141 = pneg %p53
        %p142 = pneg %p50
        %p143 = pneg %p79
        %p144 = pneg %p76
        %s145 = sand.u32 %s66, 1
        %s146 = scalar_lea.sflag [#allocation4], %s145
        %s147 = sand.u32 %s66, 1
        %s148 = smul.addr %s147, 8
        %s149 = scalar_lea.vmem [#allocation5], %s148
        %s150 = sadd.s32 %s22, %s23
        %s151 = smul.u32 2, %s150
        %p152 = scmp.eq.s32.totalorder %s23, 0
        // Predicated region
        $region29: #{tpu_custom_call.1} parent=23 // pred_check
          %p153 = pneg %p152
        $region30: #{tpu_custom_call.1} parent=23 // pred_check_branch
          %155 = sbr.rel (%p153) target = $region32
        $region31: #{tpu_custom_call.1} parent=23 // pred_region
          %156 = vst [vmem:[%s149] sm:$0xff] 0.0
        $region32: #{tpu_custom_call.1} parent=23 // pred_fallthru
          _
        %v157 = vld [vmem:[%s131] sm:$0xff]
        %v158 = vld [vmem:[%s131 + $0x8] sm:$0xff]
        %v159 = vsub.f32 0.0, %v157
        %v160 = vsub.f32 0.0, %v158
        %v161 = vmax.f32 %v159, 0.0
        %v162 = vmax.f32 %v160, 0.0
        %v163 = vand.u32 2147483647, %v159
        %v164 = vand.u32 2147483647, %v160
        %v165 = vsub.f32 0.0, %v163
        %v166 = vsub.f32 0.0, %v164
        %v167 = vmul.f32 %v165, 1.442695
        %v168 = vpow.pop %v167
        %v169 = vmul.f32 %v166, 1.442695
        %v170 = vpow.pop %v169
        %v171 = vadd.f32 %v168, 1.0
        %v172 = vadd.f32 %v170, 1.0
        %v173 = vlog2.pop %v171
        %v174 = vmul.f32 %v173, 0.6931472
        %v175 = vlog2.pop %v172
        %v176 = vmul.f32 %v175, 0.6931472
        %v177 = vadd.f32 %v161, %v174
        %v178 = vadd.f32 %v162, %v176
        %v179 = vmin.f32 %v177, 100.0
        %v180 = vmin.f32 %v178, 100.0
        %v181 = vld [vmem:[%s149] sm:$0xff]
        %v182 = vadd.f32 %v179, %v180
        %v183 = vadd.f32 %v181, %v182
        %184 = vst [vmem:[%s149] sm:$0xff] %v183
        %s185 = sand.u32 %s66, 1
        %s186 = scalar_lea.sflag [#allocation4], %s185
        %s187 = sand.u32 %s66, 1
        %s188 = smul.addr %s187, 8
        %s189 = scalar_lea.vmem [#allocation5], %s188
        // Predicated region
        $region33: #{tpu_custom_call.1} parent=23 // pred_check
          %p190 = pneg %p76
        $region34: #{tpu_custom_call.1} parent=23 // pred_check_branch
          %192 = sbr.rel (%p190) target = $region36
        $region35: #{tpu_custom_call.1} parent=23 // pred_region
          %s194 = ssub.s32 128, 128
          %195 = vsyncadd %s186, %s194
          %s196 = smul.addr %s22, 128
          %s197 = scalar_lea.hbm %s1, %s196
          %s199 = sshll.u32 %s189, 4
          %s200 = int_to_ptr.vmem [resolvable:$true] %s199
          %202 = dma.vmem_to_hbm [thread:$0]  %s200, 128, %s197, %s186
        $region36: #{tpu_custom_call.1} parent=23 // pred_fallthru
          _
      $region24: #{tpu_custom_call.1} parent=5 // pred_fallthru
        _
      %p203 = scmp.le.s32.totalorder 2, %s13
      // Predicated region
      $region37: #{tpu_custom_call.1} parent=5 // pred_check
        %p204 = pneg %p203
      $region38: #{tpu_custom_call.1} parent=5 // pred_check_branch
        %206 = sbr.rel (%p204) target = $region40
      $region39: #{tpu_custom_call.1} parent=5 // pred_region
        %s207 = ssub.s32 %s13, 2
        // Predicated region
        $region41: #{tpu_custom_call.1} parent=39 // pred_check
          %p208 = pneg %p82
        $region42: #{tpu_custom_call.1} parent=39 // pred_check_branch
          %210 = sbr.rel (%p208) target = $region44
        $region43: #{tpu_custom_call.1} parent=39 // pred_region
          %s211 = sand.u32 %s67, 1
          %s212 = scalar_lea.sflag [#allocation4], %s211
          %s213 = sand.u32 %s67, 1
          %s214 = smul.addr %s213, 8
          %s215 = scalar_lea.vmem [#allocation5], %s214
          %216 = dma.done %s212, 128
        $region44: #{tpu_custom_call.1} parent=39 // pred_fallthru
          _
      $region40: #{tpu_custom_call.1} parent=5 // pred_fallthru
        _
    $region6: #{tpu_custom_call.1} parent=1 // loop_footer
      %s17 = sadd.s32 1, %s13
    $region7: #{tpu_custom_call.1} parent=1 // loop_footer_branch
      %12 = sbr.rel target = $region3
    $region8: #{tpu_custom_call.1} parent=1 // loop_exit
      _
    %217 = vsyncpa [#allocation3], 1
    %s218 = scalar_lea.sflag [#allocation3], 1
    %219 = vsyncpa %s218, 1
    %220 = vsyncpa [#allocation4], 1
    %s221 = scalar_lea.sflag [#allocation4], 1
    %222 = vsyncpa %s221, 1

</llo_original>
